<compile_context>
chip_gen: v7x
topology: tpu7x:2x2x1
jax: 0.10.0
libtpu: 0.0.40
codegen_flags: <defaults>
</compile_context>

<pallas_src>
import jax
import jax.numpy as jnp
import numpy as np
from jax.experimental import pallas as pl
from jax.experimental.pallas import tpu as pltpu

C_OUT = 16
KSIZE = 6
KPAD = 8          # taps padded to 8 sublanes; extra rows have zero weight
STRIDE = 4
BN_EPS = 1e-5
N_BRANCH = 3      # x1, x2, x3


def conv_bn_relu_cat_kernel(taps_ref, w_ref, b_ref, o_ref):
    """taps_ref: (B, KPAD, T)   -- conv taps (rows 0..5 real), L_out tile on lanes
       w_ref:    (C_OUT, KPAD)  -- conv weight with BN scale pre-folded (cols 6,7 zero)
       b_ref:    (C_OUT, 1)     -- folded BN bias
       o_ref:    (B, 3*C_OUT, T)-- fused 3-way channel concat output block
    Conv1d(k=6, stride=4) as 6 VPU broadcast-FMAs, fused BN bias + ReLU."""
    taps = taps_ref[...]                                   # (B, KPAD, T)
    w = w_ref[...]                                         # (C_OUT, KPAD)
    acc = w[None, :, 0:1] * taps[:, 0:1, :]                # (B, C_OUT, T)
    for k in range(1, KSIZE):                              # unrolled at trace time
        acc = acc + w[None, :, k:k + 1] * taps[:, k:k + 1, :]
    y = jnp.maximum(acc + b_ref[...][None, :, :], 0.0)     # folded BN bias + ReLU
    # fused torch.cat([x1, x2, x3], dim=1): branches are identical in eval mode
    o_ref[:, 0:C_OUT, :] = y
    o_ref[:, C_OUT:2 * C_OUT, :] = y
    o_ref[:, 2 * C_OUT:3 * C_OUT, :] = y


def multiscale_cnn_module1(x, conv_w, bn_gamma, bn_beta, bn_mean, bn_var,
                           *, tile_l=2048):
    """x: (N, 1, L) float32  ->  (N, 48, L_out) float32 (eval-mode forward)."""
    N, C_in, L = x.shape
    assert C_in == 1
    assert tile_l % 128 == 0
    L_out = (L - KSIZE) // STRIDE + 1
    assert L_out >= 1

    # ---- lane tiling over L_out: big, lane-dense (multiple of 128) tiles ----
    n_l = pl.cdiv(L_out, tile_l)
    tile = pl.cdiv(pl.cdiv(L_out, n_l), 128) * 128     # <= tile_l, multiple of 128
    l_pad = n_l * tile

    # ---- batch blocking: fold batch rows when the L grid degenerates ----
    b_tile = 1
    if n_l == 1 and N > 2:
        for cand in (8, 4, 2):
            if N % cand == 0 and N // cand >= 2:       # keep >=2 parallel steps (v7x)
                b_tile = cand
                break

    # ---- taps: pad the RAW 1-D signal once, then 6 strided slices stacked on
    #      the sublane axis and padded to 8 rows (aligned; rows 6,7 unused) ----
    x1d = x[:, 0, :].astype(jnp.float32)                               # (N, L)
    need = STRIDE * l_pad + (KSIZE - STRIDE)
    if need > L:
        x1d = jnp.pad(x1d, ((0, 0), (0, need - L)))
    taps = [
        jax.lax.slice(x1d, (0, k), (N, k + (l_pad - 1) * STRIDE + 1), (1, STRIDE))
        for k in range(KSIZE)
    ]
    taps += [taps[0], taps[1]]                                         # sublane pad -> 8 rows
    x_taps = jnp.stack(taps, axis=1)                                   # (N, KPAD, l_pad)

    # ---- fold eval-mode BatchNorm into the conv weight and a per-channel bias ----
    scale = bn_gamma / jnp.sqrt(bn_var + BN_EPS)                       # (C_OUT,)
    w = (conv_w.reshape(C_OUT, KSIZE) * scale[:, None]).astype(jnp.float32)
    w = jnp.pad(w, ((0, 0), (0, KPAD - KSIZE)))                        # (C_OUT, KPAD)
    bias = (bn_beta - bn_mean * scale).reshape(C_OUT, 1).astype(jnp.float32)

    grid = (N // b_tile, n_l)
    bytes_accessed = (N * KPAD * l_pad * 4                    # taps read
                      + C_OUT * KPAD * 4 + C_OUT * 4          # weight + bias
                      + N * N_BRANCH * C_OUT * l_pad * 4)     # output write
    out = pl.pallas_call(
        conv_bn_relu_cat_kernel,
        out_shape=jax.ShapeDtypeStruct((N, N_BRANCH * C_OUT, l_pad), jnp.float32),
        grid=grid,
        in_specs=[
            pl.BlockSpec((b_tile, KPAD, tile), lambda n, j: (n, 0, j)),   # taps
            pl.BlockSpec((C_OUT, KPAD), lambda n, j: (0, 0)),             # folded weight
            pl.BlockSpec((C_OUT, 1), lambda n, j: (0, 0)),                # folded bias
        ],
        out_specs=pl.BlockSpec((b_tile, N_BRANCH * C_OUT, tile),
                               lambda n, j: (n, 0, j)),
        compiler_params=pltpu.CompilerParams(
            dimension_semantics=("parallel", "parallel"),
            vmem_limit_bytes=32 * 1024 * 1024,
        ),
        cost_estimate=pl.CostEstimate(
            flops=2 * N * C_OUT * KSIZE * l_pad,
            transcendentals=0,
            bytes_accessed=bytes_accessed,
        ),
    )(x_taps, w, bias)

    if l_pad != L_out:
        out = out[:, :, :L_out]   # padded tail computes relu(bias); sliced off here
    # TODO(synk): training-mode dropout / batch-stat BatchNorm not modeled (eval semantics used).
    return out


if __name__ == "__main__":
    key = jax.random.PRNGKey(0)
    k_x, k_w, k_g, k_b, k_m, k_v = jax.random.split(key, 6)

    N = 2
    L_out_demo = 1024                          # lane-dense; grid = (2, 1) at tile=1024
    L = (L_out_demo - 1) * STRIDE + KSIZE      # 4098
    x = jax.random.normal(k_x, (N, 1, L), dtype=jnp.float32)

    conv_w = jax.random.normal(k_w, (C_OUT, 1, KSIZE), dtype=jnp.float32) * 0.2
    bn_gamma = 1.0 + 0.1 * jax.random.normal(k_g, (C_OUT,), dtype=jnp.float32)
    bn_beta = 0.1 * jax.random.normal(k_b, (C_OUT,), dtype=jnp.float32)
    bn_mean = 0.05 * jax.random.normal(k_m, (C_OUT,), dtype=jnp.float32)
    bn_var = jnp.abs(1.0 + 0.1 * jax.random.normal(k_v, (C_OUT,), dtype=jnp.float32))

    fwd = jax.jit(multiscale_cnn_module1)
    out = jax.block_until_ready(fwd(x, conv_w, bn_gamma, bn_beta, bn_mean, bn_var))

    # sanity check against a pure-JAX reference (lax conv, NCL layout)
    ref_conv = jax.lax.conv_general_dilated(
        x, conv_w, window_strides=(STRIDE,), padding="VALID",
        dimension_numbers=("NCH", "OIH", "NCH"))
    ref_scale = bn_gamma / jnp.sqrt(bn_var + BN_EPS)
    ref_bn = (ref_conv - bn_mean[None, :, None]) * ref_scale[None, :, None] \
        + bn_beta[None, :, None]
    ref = jnp.concatenate([jnp.maximum(ref_bn, 0.0)] * 3, axis=1)

    assert out.shape == (N, 3 * C_OUT, (L - KSIZE) // STRIDE + 1)
    np.testing.assert_allclose(np.asarray(out), np.asarray(ref), rtol=1e-5, atol=1e-5)

    print("KERNEL_OK")
</pallas_src>

<mosaic_0001>
module attributes {stable_mosaic.version = 11 : i64} {
  func.func @conv_bn_relu_cat_kernel(%arg0: i32, %arg1: i32, %arg2: memref<1x8x1024xf32, #tpu.memory_space<vmem>>, %arg3: memref<16x8xf32, #tpu.memory_space<vmem>>, %arg4: memref<16x1xf32, #tpu.memory_space<vmem>>, %arg5: memref<1x48x1024xf32, #tpu.memory_space<vmem>>) attributes {dimension_semantics = [#tpu.dimension_semantics<parallel>, #tpu.dimension_semantics<parallel>], iteration_bounds = array<i64: 2, 1>, scalar_prefetch = 0 : i64, scratch_operands = 0 : i64, tpu.core_type = #tpu.core_type<tc>, window_params = [{transform_indices = @transform_0, window_bounds = array<i64: 1, 8, 1024>}, {pipeline_mode = #tpu.pipeline_mode<synchronous>, transform_indices = @transform_1, window_bounds = array<i64: 16, 8>}, {pipeline_mode = #tpu.pipeline_mode<synchronous>, transform_indices = @transform_2, window_bounds = array<i64: 16, 1>}, {transform_indices = @transform_3, window_bounds = array<i64: 1, 48, 1024>}]} {
    %c0 = arith.constant 0 : index
    %c0_0 = arith.constant 0 : index
    %c0_1 = arith.constant 0 : index
    %0 = vector.load %arg2[%c0, %c0_0, %c0_1] : memref<1x8x1024xf32, #tpu.memory_space<vmem>>, vector<1x8x1024xf32>
    %c0_2 = arith.constant 0 : index
    %c0_3 = arith.constant 0 : index
    %1 = vector.load %arg3[%c0_2, %c0_3] : memref<16x8xf32, #tpu.memory_space<vmem>>, vector<16x8xf32>
    %2 = vector.extract_strided_slice %1 {offsets = [0, 0], sizes = [16, 1], strides = [1, 1]} : vector<16x8xf32> to vector<16x1xf32>
    %3 = vector.shape_cast %2 : vector<16x1xf32> to vector<1x16x1xf32>
    %4 = vector.extract_strided_slice %0 {offsets = [0, 0, 0], sizes = [1, 1, 1024], strides = [1, 1, 1]} : vector<1x8x1024xf32> to vector<1x1x1024xf32>
    %5 = vector.broadcast %3 : vector<1x16x1xf32> to vector<1x16x1024xf32>
    %6 = vector.broadcast %4 : vector<1x1x1024xf32> to vector<1x16x1024xf32>
    %7 = arith.mulf %5, %6 : vector<1x16x1024xf32>
    %8 = vector.extract_strided_slice %1 {offsets = [0, 1], sizes = [16, 1], strides = [1, 1]} : vector<16x8xf32> to vector<16x1xf32>
    %9 = vector.shape_cast %8 : vector<16x1xf32> to vector<1x16x1xf32>
    %10 = vector.extract_strided_slice %0 {offsets = [0, 1, 0], sizes = [1, 1, 1024], strides = [1, 1, 1]} : vector<1x8x1024xf32> to vector<1x1x1024xf32>
    %11 = vector.broadcast %9 : vector<1x16x1xf32> to vector<1x16x1024xf32>
    %12 = vector.broadcast %10 : vector<1x1x1024xf32> to vector<1x16x1024xf32>
    %13 = arith.mulf %11, %12 : vector<1x16x1024xf32>
    %14 = arith.addf %7, %13 : vector<1x16x1024xf32>
    %15 = vector.extract_strided_slice %1 {offsets = [0, 2], sizes = [16, 1], strides = [1, 1]} : vector<16x8xf32> to vector<16x1xf32>
    %16 = vector.shape_cast %15 : vector<16x1xf32> to vector<1x16x1xf32>
    %17 = vector.extract_strided_slice %0 {offsets = [0, 2, 0], sizes = [1, 1, 1024], strides = [1, 1, 1]} : vector<1x8x1024xf32> to vector<1x1x1024xf32>
    %18 = vector.broadcast %16 : vector<1x16x1xf32> to vector<1x16x1024xf32>
    %19 = vector.broadcast %17 : vector<1x1x1024xf32> to vector<1x16x1024xf32>
    %20 = arith.mulf %18, %19 : vector<1x16x1024xf32>
    %21 = arith.addf %14, %20 : vector<1x16x1024xf32>
    %22 = vector.extract_strided_slice %1 {offsets = [0, 3], sizes = [16, 1], strides = [1, 1]} : vector<16x8xf32> to vector<16x1xf32>
    %23 = vector.shape_cast %22 : vector<16x1xf32> to vector<1x16x1xf32>
    %24 = vector.extract_strided_slice %0 {offsets = [0, 3, 0], sizes = [1, 1, 1024], strides = [1, 1, 1]} : vector<1x8x1024xf32> to vector<1x1x1024xf32>
    %25 = vector.broadcast %23 : vector<1x16x1xf32> to vector<1x16x1024xf32>
    %26 = vector.broadcast %24 : vector<1x1x1024xf32> to vector<1x16x1024xf32>
    %27 = arith.mulf %25, %26 : vector<1x16x1024xf32>
    %28 = arith.addf %21, %27 : vector<1x16x1024xf32>
    %29 = vector.extract_strided_slice %1 {offsets = [0, 4], sizes = [16, 1], strides = [1, 1]} : vector<16x8xf32> to vector<16x1xf32>
    %30 = vector.shape_cast %29 : vector<16x1xf32> to vector<1x16x1xf32>
    %31 = vector.extract_strided_slice %0 {offsets = [0, 4, 0], sizes = [1, 1, 1024], strides = [1, 1, 1]} : vector<1x8x1024xf32> to vector<1x1x1024xf32>
    %32 = vector.broadcast %30 : vector<1x16x1xf32> to vector<1x16x1024xf32>
    %33 = vector.broadcast %31 : vector<1x1x1024xf32> to vector<1x16x1024xf32>
    %34 = arith.mulf %32, %33 : vector<1x16x1024xf32>
    %35 = arith.addf %28, %34 : vector<1x16x1024xf32>
    %36 = vector.extract_strided_slice %1 {offsets = [0, 5], sizes = [16, 1], strides = [1, 1]} : vector<16x8xf32> to vector<16x1xf32>
    %37 = vector.shape_cast %36 : vector<16x1xf32> to vector<1x16x1xf32>
    %38 = vector.extract_strided_slice %0 {offsets = [0, 5, 0], sizes = [1, 1, 1024], strides = [1, 1, 1]} : vector<1x8x1024xf32> to vector<1x1x1024xf32>
    %39 = vector.broadcast %37 : vector<1x16x1xf32> to vector<1x16x1024xf32>
    %40 = vector.broadcast %38 : vector<1x1x1024xf32> to vector<1x16x1024xf32>
    %41 = arith.mulf %39, %40 : vector<1x16x1024xf32>
    %42 = arith.addf %35, %41 : vector<1x16x1024xf32>
    %c0_4 = arith.constant 0 : index
    %c0_5 = arith.constant 0 : index
    %43 = vector.load %arg4[%c0_4, %c0_5] : memref<16x1xf32, #tpu.memory_space<vmem>>, vector<16x1xf32>
    %44 = vector.shape_cast %43 : vector<16x1xf32> to vector<1x16x1xf32>
    %45 = vector.broadcast %44 : vector<1x16x1xf32> to vector<1x16x1024xf32>
    %46 = arith.addf %42, %45 : vector<1x16x1024xf32>
    %cst = arith.constant 0.000000e+00 : f32
    %47 = vector.broadcast %cst : f32 to vector<1x16x1024xf32>
    %48 = arith.maximumf %46, %47 : vector<1x16x1024xf32>
    %c0_6 = arith.constant 0 : index
    %c0_7 = arith.constant 0 : index
    %c0_8 = arith.constant 0 : index
    %49 = vector.load %arg5[%c0_6, %c0_7, %c0_8] : memref<1x48x1024xf32, #tpu.memory_space<vmem>>, vector<1x16x1024xf32>
    tpu.vector_store %arg5[%c0_6, %c0_7, %c0_8], %48 {strides = array<i32>} : memref<1x48x1024xf32, #tpu.memory_space<vmem>>, vector<1x16x1024xf32>,
    %c0_9 = arith.constant 0 : index
    %c16 = arith.constant 16 : index
    %c0_10 = arith.constant 0 : index
    %50 = vector.load %arg5[%c0_9, %c16, %c0_10] : memref<1x48x1024xf32, #tpu.memory_space<vmem>>, vector<1x16x1024xf32>
    tpu.vector_store %arg5[%c0_9, %c16, %c0_10], %48 {strides = array<i32>} : memref<1x48x1024xf32, #tpu.memory_space<vmem>>, vector<1x16x1024xf32>,
    %c0_11 = arith.constant 0 : index
    %c32 = arith.constant 32 : index
    %c0_12 = arith.constant 0 : index
    %51 = vector.load %arg5[%c0_11, %c32, %c0_12] : memref<1x48x1024xf32, #tpu.memory_space<vmem>>, vector<1x16x1024xf32>
    tpu.vector_store %arg5[%c0_11, %c32, %c0_12], %48 {strides = array<i32>} : memref<1x48x1024xf32, #tpu.memory_space<vmem>>, vector<1x16x1024xf32>,
    return
  }
  func.func @transform_0(%arg0: i32, %arg1: i32) -> (i32, i32, i32) {
    %c0_i32 = arith.constant 0 : i32
    %c0_i32_0 = arith.constant 0 : i32
    return %arg0, %c0_i32, %arg1 : i32, i32, i32
  }
  func.func @transform_1(%arg0: i32, %arg1: i32) -> (i32, i32) {
    %c0_i32 = arith.constant 0 : i32
    %c0_i32_0 = arith.constant 0 : i32
    %c0_i32_1 = arith.constant 0 : i32
    return %c0_i32, %c0_i32_0 : i32, i32
  }
  func.func @transform_2(%arg0: i32, %arg1: i32) -> (i32, i32) {
    %c0_i32 = arith.constant 0 : i32
    %c0_i32_0 = arith.constant 0 : i32
    %c0_i32_1 = arith.constant 0 : i32
    return %c0_i32, %c0_i32_0 : i32, i32
  }
  func.func @transform_3(%arg0: i32, %arg1: i32) -> (i32, i32, i32) {
    %c0_i32 = arith.constant 0 : i32
    %c0_i32_0 = arith.constant 0 : i32
    return %arg0, %c0_i32, %arg1 : i32, i32, i32
  }
}

</mosaic_0001>

<llo_original>
// kernel: multiscale_cnn_module1.1
$region0: #{multiscale_cnn_module1.1}
  #allocation0 [shape = 'u32[]', space=smem, size = 0x4, offset = 0x4, fixed_abs, tag = 'smem constant byte address 0x4 - core index']
  #allocation1 [shape = 'u32[144,128]{1,0:T(1,128)}', space=vmem, size = 0x12000, scoped, tag = 'internal scratch']
  %s0 = inlined_call_operand.vmem [shape: f32[2,8,1024], index: 0, kind: input, shape index: {}]
  %s1 = inlined_call_operand.vmem [shape: f32[16,8], index: 1, kind: input, shape index: {}]
  %s2 = inlined_call_operand.vmem [shape: f32[16,1], index: 2, kind: input, shape index: {}]
  %s3 = inlined_call_operand.hbm [shape: f32[2,48,1024], index: 3, kind: output, shape index: {}]
  %s4 = sld [smem:[#allocation0]]
  $region45: #{multiscale_cnn_module1.1} parent=0
    _
  %s6 = ssub.s32 1, %s4
  %s7 = scalar_select 0, %s6, %s4
  $region1: #{multiscale_cnn_module1.1} parent=0
    #allocation2 [shape = 'u8[393216]{0}', space=vmem, size = 0x60000, scoped, tag = 'output window, operand 0']
    #allocation3 [shape = 's32[2]{0}', space=sflag, size = 0x8, scoped, tag = 'scoped memory for multiscale_cnn_module1.1']
    %8 = vsyncpa [#allocation3], 0
    %s9 = scalar_lea.sflag [#allocation3], 1
    %10 = vsyncpa %s9, 0
    loop: start=0, step=1, limit=4
    $region2: #{multiscale_cnn_module1.1} parent=1 // loop_pre_header
      _
    $region3: #{multiscale_cnn_module1.1} parent=1 // loop_header
      %s12 = sphi 0, %s16
      %p13 = scmp.ge.s32.totalorder %s12, 4
      %s19 = sphi 0, %s31
      %s20 = sphi 0, %s27
      %s21 = sphi 0, %s19
      %s22 = sphi 0, %s20
      %s23 = sphi 0, %s21
      %s24 = sphi 0, %s22
      %s36 = sphi 0, %s38
      %s39 = sphi 0, %s36
      %s40 = sphi 0, %s39
      %s56 = sphi 0, %s40
      %s60 = sphi 0, %s60
      %s62 = sphi 0, %s60
      %s63 = sphi 0, %s62
      %s77 = sphi 0, %s63
      %s81 = sphi 0, %s81
      %s83 = sphi 0, %s81
      %s84 = sphi 0, %s83
      %s98 = sphi 0, %s84
      %s106 = sphi 0, %s108
      %s109 = sphi 0, %s106
      %s110 = sphi 0, %s109
      %s126 = sphi 0, %s110
    $region4: #{multiscale_cnn_module1.1} parent=1 // loop_header_branch
      %15 = sbr.rel (%p13) target = $region8
    $region5: #{multiscale_cnn_module1.1} parent=1 // loop_body
      %s17 = ssub.s32 %s12, 1
      %s18 = ssub.s32 %s12, 2
      %s25 = sadd.s32 1, %s20
      %p26 = scmp.ge.s32.totalorder %s25, 1
      %s27 = scalar_select %p26, 0, %s25
      %s28 = sadd.s32 1, %s19
      %s29 = scalar_select %p26, %s28, %s19
      %p30 = scmp.ge.s32.totalorder %s29, 2
      %s31 = scalar_select %p30, 0, %s29
      %s32 = ssub.s32 %s19, %s31
      %s33 = ssub.s32 %s20, %s27
      %s34 = sor.u32 %s32, %s33
      %p35 = scmp.eq.s32.totalorder %s34, 0
      %s37 = sadd.s32 %s36, 1
      %s38 = scalar_select %p35, %s36, %s37
      %p41 = pneg %p35
      %p42 = scmp.eq.s32.totalorder %s12, 1
      %p43 = por %p41, %p42
      %p44 = scmp.ne.s32.totalorder %s36, %s39
      %p45 = scmp.eq.s32.totalorder %s12, 0
      %p46 = por %p44, %p45
      %p47 = scmp.ne.s32.totalorder %s36, %s39
      %p48 = scmp.eq.s32.totalorder %s17, 1
      %p49 = por %p47, %p48
      %p50 = scmp.ne.s32.totalorder %s39, %s40
      %p51 = scmp.eq.s32.totalorder %s17, 0
      %p52 = por %p50, %p51
      %p53 = scmp.ne.s32.totalorder %s39, %s40
      %p54 = scmp.eq.s32.totalorder %s18, 1
      %p55 = por %p53, %p54
      %p57 = scmp.ne.s32.totalorder %s40, %s56
      %p58 = scmp.eq.s32.totalorder %s18, 0
      %p59 = por %p57, %p58
      %s61 = sadd.s32 %s60, 1
      %p64 = scmp.eq.s32.totalorder %s12, 1
      %p65 = scmp.ne.s32.totalorder %s60, %s62
      %p66 = scmp.eq.s32.totalorder %s12, 0
      %p67 = por %p65, %p66
      %p68 = scmp.ne.s32.totalorder %s60, %s62
      %p69 = scmp.eq.s32.totalorder %s17, 1
      %p70 = por %p68, %p69
      %p71 = scmp.ne.s32.totalorder %s62, %s63
      %p72 = scmp.eq.s32.totalorder %s17, 0
      %p73 = por %p71, %p72
      %p74 = scmp.ne.s32.totalorder %s62, %s63
      %p75 = scmp.eq.s32.totalorder %s18, 1
      %p76 = por %p74, %p75
      %p78 = scmp.ne.s32.totalorder %s63, %s77
      %p79 = scmp.eq.s32.totalorder %s18, 0
      %p80 = por %p78, %p79
      %s82 = sadd.s32 %s81, 1
      %p85 = scmp.eq.s32.totalorder %s12, 1
      %p86 = scmp.ne.s32.totalorder %s81, %s83
      %p87 = scmp.eq.s32.totalorder %s12, 0
      %p88 = por %p86, %p87
      %p89 = scmp.ne.s32.totalorder %s81, %s83
      %p90 = scmp.eq.s32.totalorder %s17, 1
      %p91 = por %p89, %p90
      %p92 = scmp.ne.s32.totalorder %s83, %s84
      %p93 = scmp.eq.s32.totalorder %s17, 0
      %p94 = por %p92, %p93
      %p95 = scmp.ne.s32.totalorder %s83, %s84
      %p96 = scmp.eq.s32.totalorder %s18, 1
      %p97 = por %p95, %p96
      %p99 = scmp.ne.s32.totalorder %s84, %s98
      %p100 = scmp.eq.s32.totalorder %s18, 0
      %p101 = por %p99, %p100
      %s102 = ssub.s32 %s19, %s31
      %s103 = ssub.s32 %s20, %s27
      %s104 = sor.u32 %s102, %s103
      %p105 = scmp.eq.s32.totalorder %s104, 0
      %s107 = sadd.s32 %s106, 1
      %s108 = scalar_select %p105, %s106, %s107
      %p111 = pneg %p105
      %p112 = scmp.eq.s32.totalorder %s12, 1
      %p113 = por %p111, %p112
      %p114 = scmp.ne.s32.totalorder %s106, %s109
      %p115 = scmp.eq.s32.totalorder %s12, 0
      %p116 = por %p114, %p115
      %p117 = scmp.ne.s32.totalorder %s106, %s109
      %p118 = scmp.eq.s32.totalorder %s17, 1
      %p119 = por %p117, %p118
      %p120 = scmp.ne.s32.totalorder %s109, %s110
      %p121 = scmp.eq.s32.totalorder %s17, 0
      %p122 = por %p120, %p121
      %p123 = scmp.ne.s32.totalorder %s109, %s110
      %p124 = scmp.eq.s32.totalorder %s18, 1
      %p125 = por %p123, %p124
      %p127 = scmp.ne.s32.totalorder %s110, %s126
      %p128 = scmp.eq.s32.totalorder %s18, 0
      %p129 = por %p127, %p128
      %p130 = scmp.le.s32.totalorder 1, %s12
      %p131 = scmp.lt.s32.totalorder %s12, 3
      %p132 = pnand %p130, %p131
      %p133 = pneg %p132
      // Predicated region
      $region9: #{multiscale_cnn_module1.1} parent=5 // pred_check
        _
      $region10: #{multiscale_cnn_module1.1} parent=5 // pred_check_branch
        %135 = sbr.rel (%p132) target = $region12
      $region11: #{multiscale_cnn_module1.1} parent=5 // pred_region
        %s136 = ssub.s32 %s12, 1
        // Predicated region
        $region13: #{multiscale_cnn_module1.1} parent=11 // pred_check
          %p137 = pneg %p73
        $region14: #{multiscale_cnn_module1.1} parent=11 // pred_check_branch
          %139 = sbr.rel (%p137) target = $region16
        $region15: #{multiscale_cnn_module1.1} parent=11 // pred_region
          _
        $region16: #{multiscale_cnn_module1.1} parent=11 // pred_fallthru
          _
        // Predicated region
        $region17: #{multiscale_cnn_module1.1} parent=11 // pred_check
          %p140 = pneg %p94
        $region18: #{multiscale_cnn_module1.1} parent=11 // pred_check_branch
          %142 = sbr.rel (%p140) target = $region20
        $region19: #{multiscale_cnn_module1.1} parent=11 // pred_region
          _
        $region20: #{multiscale_cnn_module1.1} parent=11 // pred_fallthru
          _
      $region12: #{multiscale_cnn_module1.1} parent=5 // pred_fallthru
        _
      %p143 = scmp.lt.s32.totalorder %s12, 2
      // Predicated region
      $region21: #{multiscale_cnn_module1.1} parent=5 // pred_check
        %p144 = pneg %p143
      $region22: #{multiscale_cnn_module1.1} parent=5 // pred_check_branch
        %146 = sbr.rel (%p144) target = $region24
      $region23: #{multiscale_cnn_module1.1} parent=5 // pred_region
        // Predicated region
        $region25: #{multiscale_cnn_module1.1} parent=23 // pred_check
          %p147 = pneg %p46
        $region26: #{multiscale_cnn_module1.1} parent=23 // pred_check_branch
          %149 = sbr.rel (%p147) target = $region28
        $region27: #{multiscale_cnn_module1.1} parent=23 // pred_region
          %s150 = smul.u32 8, %s20
          %p151 = scmp.lt.s32.totalorder %s19, 1
          %s152 = scalar_select %p151, %s19, 1
          %p153 = scmp.lt.s32.totalorder %s150, 7
          %s154 = scalar_select %p153, %s150, 7
          %s155 = smul.addr %s152, 8
          %s156 = sadd.s32 %s154, %s155
          %s157 = smul.addr %s156, 8
          %s158 = scalar_lea.vmem %s0, %s157
          %s159 = smul.u32 8, %s20
        $region28: #{multiscale_cnn_module1.1} parent=23 // pred_fallthru
          _
      $region24: #{multiscale_cnn_module1.1} parent=5 // pred_fallthru
        _
      %p160 = scmp.le.s32.totalorder 1, %s12
      %p161 = scmp.lt.s32.totalorder %s12, 3
      %p162 = pnand %p160, %p161
      %p163 = pneg %p162
      // Predicated region
      $region29: #{multiscale_cnn_module1.1} parent=5 // pred_check
        _
      $region30: #{multiscale_cnn_module1.1} parent=5 // pred_check_branch
        %165 = sbr.rel (%p162) target = $region32
      $region31: #{multiscale_cnn_module1.1} parent=5 // pred_region
        %s166 = ssub.s32 %s12, 1
        %s167 = smul.u32 8, %s22
        %p168 = scmp.lt.s32.totalorder %s21, 1
        %s169 = scalar_select %p168, %s21, 1
        %p170 = scmp.lt.s32.totalorder %s167, 7
        %s171 = scalar_select %p170, %s167, 7
        %s172 = smul.addr %s169, 8
        %s173 = sadd.s32 %s171, %s172
        %s174 = smul.addr %s173, 8
        %s175 = scalar_lea.vmem %s0, %s174
        %p176 = pneg %p52
        %p177 = pneg %p49
        %p178 = pneg %p73
        %p179 = pneg %p70
        %p180 = pneg %p94
        %p181 = pneg %p91
        %p182 = pneg %p122
        %p183 = pneg %p119
        %s184 = sand.u32 %s109, 1
        %s185 = scalar_lea.sflag [#allocation3], %s184
        %s186 = sand.u32 %s109, 1
        %s187 = smul.addr %s186, 384
        %s188 = scalar_lea.vmem [#allocation2], %s187
        %s189 = smul.u32 8, %s22
        %p190 = scmp.lt.s32.totalorder %s21, 1
        %s191 = scalar_select %p190, %s21, 1
        %p192 = scmp.lt.s32.totalorder %s189, 7
        %s193 = scalar_select %p192, %s189, 7
        %s194 = smul.addr %s191, 8
        %s195 = sadd.s32 %s193, %s194
        %s196 = smul.addr %s195, 8
        %s197 = scalar_lea.vmem %s0, %s196
        %s198 = smul.u32 8, %s22
        %s199 = smul.u32 8, %s22
        %v200 = vld [vmem:[%s197] sm:$0xff]
        %v201 = vld [vmem:[%s197 + $0x8] sm:$0xff]
        %v202 = vld [vmem:[%s197 + $0x10] sm:$0xff]
        %v203 = vld [vmem:[%s197 + $0x18] sm:$0xff]
        %v204 = vld [vmem:[%s197 + $0x20] sm:$0xff]
        %v205 = vld [vmem:[%s197 + $0x28] sm:$0xff]
        %v206 = vld [vmem:[%s197 + $0x30] sm:$0xff]
        %v207 = vld [vmem:[%s197 + $0x38] sm:$0xff]
        %v208 = vld [vmem:[%s1] sm:$0xff]
        %v209 = vld [vmem:[%s1 + $0x8] sm:$0xff]
        %211 = vset.pattern.permute.xlu0 0
        %212 = vperm.xlu0 %211, %v208
        %v213 = vpop.permute.xlu0 %212
        %216 = vset.pattern.permute.xlu0 0
        %217 = vperm.xlu0 %216, %v209
        %v218 = vpop.permute.xlu0 %217
        %v220 = vlaneseq
        %v221 = vshrl.u32 %v220, 7
        %v222 = vsub.s32 0, %v221
        %v223 = vrot.slane %v200, %v222
        %v224 = vlaneseq
        %v225 = vshrl.u32 %v224, 7
        %v226 = vsub.s32 0, %v225
        %v227 = vrot.slane %v201, %v226
        %v228 = vlaneseq
        %v229 = vshrl.u32 %v228, 7
        %v230 = vsub.s32 0, %v229
        %v231 = vrot.slane %v202, %v230
        %v232 = vlaneseq
        %v233 = vshrl.u32 %v232, 7
        %v234 = vsub.s32 0, %v233
        %v235 = vrot.slane %v203, %v234
        %v236 = vlaneseq
        %v237 = vshrl.u32 %v236, 7
        %v238 = vsub.s32 0, %v237
        %v239 = vrot.slane %v204, %v238
        %v240 = vlaneseq
        %v241 = vshrl.u32 %v240, 7
        %v242 = vsub.s32 0, %v241
        %v243 = vrot.slane %v205, %v242
        %v244 = vlaneseq
        %v245 = vshrl.u32 %v244, 7
        %v246 = vsub.s32 0, %v245
        %v247 = vrot.slane %v206, %v246
        %v248 = vlaneseq
        %v249 = vshrl.u32 %v248, 7
        %v250 = vsub.s32 0, %v249
        %v251 = vrot.slane %v207, %v250
        %v252 = vmul.f32 %v213, %v223
        %v253 = vmul.f32 %v213, %v227
        %v254 = vmul.f32 %v213, %v231
        %v255 = vmul.f32 %v213, %v235
        %v256 = vmul.f32 %v213, %v239
        %v257 = vmul.f32 %v213, %v243
        %v258 = vmul.f32 %v213, %v247
        %v259 = vmul.f32 %v213, %v251
        %v260 = vmul.f32 %v218, %v223
        %v261 = vmul.f32 %v218, %v227
        %v262 = vmul.f32 %v218, %v231
        %v263 = vmul.f32 %v218, %v235
        %v264 = vmul.f32 %v218, %v239
        %v265 = vmul.f32 %v218, %v243
        %v266 = vmul.f32 %v218, %v247
        %v267 = vmul.f32 %v218, %v251
        %268 = vset.pattern.permute.xlu0 1
        %269 = vperm.xlu0 %268, %v208
        %v270 = vpop.permute.xlu0 %269
        %272 = vset.pattern.permute.xlu0 1
        %273 = vperm.xlu0 %272, %v209
        %v274 = vpop.permute.xlu0 %273
        %v276 = vlaneseq
        %v277 = vshrl.u32 %v276, 7
        %v278 = vsub.s32 1, %v277
        %v279 = vrot.slane %v200, %v278
        %v280 = vlaneseq
        %v281 = vshrl.u32 %v280, 7
        %v282 = vsub.s32 1, %v281
        %v283 = vrot.slane %v201, %v282
        %v284 = vlaneseq
        %v285 = vshrl.u32 %v284, 7
        %v286 = vsub.s32 1, %v285
        %v287 = vrot.slane %v202, %v286
        %v288 = vlaneseq
        %v289 = vshrl.u32 %v288, 7
        %v290 = vsub.s32 1, %v289
        %v291 = vrot.slane %v203, %v290
        %v292 = vlaneseq
        %v293 = vshrl.u32 %v292, 7
        %v294 = vsub.s32 1, %v293
        %v295 = vrot.slane %v204, %v294
        %v296 = vlaneseq
        %v297 = vshrl.u32 %v296, 7
        %v298 = vsub.s32 1, %v297
        %v299 = vrot.slane %v205, %v298
        %v300 = vlaneseq
        %v301 = vshrl.u32 %v300, 7
        %v302 = vsub.s32 1, %v301
        %v303 = vrot.slane %v206, %v302
        %v304 = vlaneseq
        %v305 = vshrl.u32 %v304, 7
        %v306 = vsub.s32 1, %v305
        %v307 = vrot.slane %v207, %v306
        %v308 = vmul.f32 %v270, %v279
        %v309 = vmul.f32 %v270, %v283
        %v310 = vmul.f32 %v270, %v287
        %v311 = vmul.f32 %v270, %v291
        %v312 = vmul.f32 %v270, %v295
        %v313 = vmul.f32 %v270, %v299
        %v314 = vmul.f32 %v270, %v303
        %v315 = vmul.f32 %v270, %v307
        %v316 = vmul.f32 %v274, %v279
        %v317 = vmul.f32 %v274, %v283
        %v318 = vmul.f32 %v274, %v287
        %v319 = vmul.f32 %v274, %v291
        %v320 = vmul.f32 %v274, %v295
        %v321 = vmul.f32 %v274, %v299
        %v322 = vmul.f32 %v274, %v303
        %v323 = vmul.f32 %v274, %v307
        %v324 = vadd.f32 %v252, %v308
        %v325 = vadd.f32 %v253, %v309
        %v326 = vadd.f32 %v254, %v310
        %v327 = vadd.f32 %v255, %v311
        %v328 = vadd.f32 %v256, %v312
        %v329 = vadd.f32 %v257, %v313
        %v330 = vadd.f32 %v258, %v314
        %v331 = vadd.f32 %v259, %v315
        %v332 = vadd.f32 %v260, %v316
        %v333 = vadd.f32 %v261, %v317
        %v334 = vadd.f32 %v262, %v318
        %v335 = vadd.f32 %v263, %v319
        %v336 = vadd.f32 %v264, %v320
        %v337 = vadd.f32 %v265, %v321
        %v338 = vadd.f32 %v266, %v322
        %v339 = vadd.f32 %v267, %v323
        %340 = vset.pattern.permute.xlu0 2
        %341 = vperm.xlu0 %340, %v208
        %v342 = vpop.permute.xlu0 %341
        %344 = vset.pattern.permute.xlu0 2
        %345 = vperm.xlu0 %344, %v209
        %v346 = vpop.permute.xlu0 %345
        %v348 = vlaneseq
        %v349 = vshrl.u32 %v348, 7
        %v350 = vsub.s32 2, %v349
        %v351 = vrot.slane %v200, %v350
        %v352 = vlaneseq
        %v353 = vshrl.u32 %v352, 7
        %v354 = vsub.s32 2, %v353
        %v355 = vrot.slane %v201, %v354
        %v356 = vlaneseq
        %v357 = vshrl.u32 %v356, 7
        %v358 = vsub.s32 2, %v357
        %v359 = vrot.slane %v202, %v358
        %v360 = vlaneseq
        %v361 = vshrl.u32 %v360, 7
        %v362 = vsub.s32 2, %v361
        %v363 = vrot.slane %v203, %v362
        %v364 = vlaneseq
        %v365 = vshrl.u32 %v364, 7
        %v366 = vsub.s32 2, %v365
        %v367 = vrot.slane %v204, %v366
        %v368 = vlaneseq
        %v369 = vshrl.u32 %v368, 7
        %v370 = vsub.s32 2, %v369
        %v371 = vrot.slane %v205, %v370
        %v372 = vlaneseq
        %v373 = vshrl.u32 %v372, 7
        %v374 = vsub.s32 2, %v373
        %v375 = vrot.slane %v206, %v374
        %v376 = vlaneseq
        %v377 = vshrl.u32 %v376, 7
        %v378 = vsub.s32 2, %v377
        %v379 = vrot.slane %v207, %v378
        %v380 = vmul.f32 %v342, %v351
        %v381 = vmul.f32 %v342, %v355
        %v382 = vmul.f32 %v342, %v359
        %v383 = vmul.f32 %v342, %v363
        %v384 = vmul.f32 %v342, %v367
        %v385 = vmul.f32 %v342, %v371
        %v386 = vmul.f32 %v342, %v375
        %v387 = vmul.f32 %v342, %v379
        %v388 = vmul.f32 %v346, %v351
        %v389 = vmul.f32 %v346, %v355
        %v390 = vmul.f32 %v346, %v359
        %v391 = vmul.f32 %v346, %v363
        %v392 = vmul.f32 %v346, %v367
        %v393 = vmul.f32 %v346, %v371
        %v394 = vmul.f32 %v346, %v375
        %v395 = vmul.f32 %v346, %v379
        %v396 = vadd.f32 %v324, %v380
        %v397 = vadd.f32 %v325, %v381
        %v398 = vadd.f32 %v326, %v382
        %v399 = vadd.f32 %v327, %v383
        %v400 = vadd.f32 %v328, %v384
        %v401 = vadd.f32 %v329, %v385
        %v402 = vadd.f32 %v330, %v386
        %v403 = vadd.f32 %v331, %v387
        %v404 = vadd.f32 %v332, %v388
        %v405 = vadd.f32 %v333, %v389
        %v406 = vadd.f32 %v334, %v390
        %v407 = vadd.f32 %v335, %v391
        %v408 = vadd.f32 %v336, %v392
        %v409 = vadd.f32 %v337, %v393
        %v410 = vadd.f32 %v338, %v394
        %v411 = vadd.f32 %v339, %v395
        %412 = vset.pattern.permute.xlu0 3
        %413 = vperm.xlu0 %412, %v208
        %v414 = vpop.permute.xlu0 %413
        %416 = vset.pattern.permute.xlu0 3
        %417 = vperm.xlu0 %416, %v209
        %v418 = vpop.permute.xlu0 %417
        %v420 = vlaneseq
        %v421 = vshrl.u32 %v420, 7
        %v422 = vsub.s32 3, %v421
        %v423 = vrot.slane %v200, %v422
        %v424 = vlaneseq
        %v425 = vshrl.u32 %v424, 7
        %v426 = vsub.s32 3, %v425
        %v427 = vrot.slane %v201, %v426
        %v428 = vlaneseq
        %v429 = vshrl.u32 %v428, 7
        %v430 = vsub.s32 3, %v429
        %v431 = vrot.slane %v202, %v430
        %v432 = vlaneseq
        %v433 = vshrl.u32 %v432, 7
        %v434 = vsub.s32 3, %v433
        %v435 = vrot.slane %v203, %v434
        %v436 = vlaneseq
        %v437 = vshrl.u32 %v436, 7
        %v438 = vsub.s32 3, %v437
        %v439 = vrot.slane %v204, %v438
        %v440 = vlaneseq
        %v441 = vshrl.u32 %v440, 7
        %v442 = vsub.s32 3, %v441
        %v443 = vrot.slane %v205, %v442
        %v444 = vlaneseq
        %v445 = vshrl.u32 %v444, 7
        %v446 = vsub.s32 3, %v445
        %v447 = vrot.slane %v206, %v446
        %v448 = vlaneseq
        %v449 = vshrl.u32 %v448, 7
        %v450 = vsub.s32 3, %v449
        %v451 = vrot.slane %v207, %v450
        %v452 = vmul.f32 %v414, %v423
        %v453 = vmul.f32 %v414, %v427
        %v454 = vmul.f32 %v414, %v431
        %v455 = vmul.f32 %v414, %v435
        %v456 = vmul.f32 %v414, %v439
        %v457 = vmul.f32 %v414, %v443
        %v458 = vmul.f32 %v414, %v447
        %v459 = vmul.f32 %v414, %v451
        %v460 = vmul.f32 %v418, %v423
        %v461 = vmul.f32 %v418, %v427
        %v462 = vmul.f32 %v418, %v431
        %v463 = vmul.f32 %v418, %v435
        %v464 = vmul.f32 %v418, %v439
        %v465 = vmul.f32 %v418, %v443
        %v466 = vmul.f32 %v418, %v447
        %v467 = vmul.f32 %v418, %v451
        %v468 = vadd.f32 %v396, %v452
        %v469 = vadd.f32 %v397, %v453
        %v470 = vadd.f32 %v398, %v454
        %v471 = vadd.f32 %v399, %v455
        %v472 = vadd.f32 %v400, %v456
        %v473 = vadd.f32 %v401, %v457
        %v474 = vadd.f32 %v402, %v458
        %v475 = vadd.f32 %v403, %v459
        %v476 = vadd.f32 %v404, %v460
        %v477 = vadd.f32 %v405, %v461
        %v478 = vadd.f32 %v406, %v462
        %v479 = vadd.f32 %v407, %v463
        %v480 = vadd.f32 %v408, %v464
        %v481 = vadd.f32 %v409, %v465
        %v482 = vadd.f32 %v410, %v466
        %v483 = vadd.f32 %v411, %v467
        %484 = vset.pattern.permute.xlu0 4
        %485 = vperm.xlu0 %484, %v208
        %v486 = vpop.permute.xlu0 %485
        %488 = vset.pattern.permute.xlu0 4
        %489 = vperm.xlu0 %488, %v209
        %v490 = vpop.permute.xlu0 %489
        %v492 = vlaneseq
        %v493 = vshrl.u32 %v492, 7
        %v494 = vsub.s32 4, %v493
        %v495 = vrot.slane %v200, %v494
        %v496 = vlaneseq
        %v497 = vshrl.u32 %v496, 7
        %v498 = vsub.s32 4, %v497
        %v499 = vrot.slane %v201, %v498
        %v500 = vlaneseq
        %v501 = vshrl.u32 %v500, 7
        %v502 = vsub.s32 4, %v501
        %v503 = vrot.slane %v202, %v502
        %v504 = vlaneseq
        %v505 = vshrl.u32 %v504, 7
        %v506 = vsub.s32 4, %v505
        %v507 = vrot.slane %v203, %v506
        %v508 = vlaneseq
        %v509 = vshrl.u32 %v508, 7
        %v510 = vsub.s32 4, %v509
        %v511 = vrot.slane %v204, %v510
        %v512 = vlaneseq
        %v513 = vshrl.u32 %v512, 7
        %v514 = vsub.s32 4, %v513
        %v515 = vrot.slane %v205, %v514
        %v516 = vlaneseq
        %v517 = vshrl.u32 %v516, 7
        %v518 = vsub.s32 4, %v517
        %v519 = vrot.slane %v206, %v518
        %v520 = vlaneseq
        %v521 = vshrl.u32 %v520, 7
        %v522 = vsub.s32 4, %v521
        %v523 = vrot.slane %v207, %v522
        %v524 = vmul.f32 %v486, %v495
        %v525 = vmul.f32 %v486, %v499
        %v526 = vmul.f32 %v486, %v503
        %v527 = vmul.f32 %v486, %v507
        %v528 = vmul.f32 %v486, %v511
        %v529 = vmul.f32 %v486, %v515
        %v530 = vmul.f32 %v486, %v519
        %v531 = vmul.f32 %v486, %v523
        %v532 = vmul.f32 %v490, %v495
        %v533 = vmul.f32 %v490, %v499
        %v534 = vmul.f32 %v490, %v503
        %v535 = vmul.f32 %v490, %v507
        %v536 = vmul.f32 %v490, %v511
        %v537 = vmul.f32 %v490, %v515
        %v538 = vmul.f32 %v490, %v519
        %v539 = vmul.f32 %v490, %v523
        %v540 = vadd.f32 %v468, %v524
        %v541 = vadd.f32 %v469, %v525
        %v542 = vadd.f32 %v470, %v526
        %v543 = vadd.f32 %v471, %v527
        %v544 = vadd.f32 %v472, %v528
        %v545 = vadd.f32 %v473, %v529
        %v546 = vadd.f32 %v474, %v530
        %v547 = vadd.f32 %v475, %v531
        %v548 = vadd.f32 %v476, %v532
        %v549 = vadd.f32 %v477, %v533
        %v550 = vadd.f32 %v478, %v534
        %v551 = vadd.f32 %v479, %v535
        %v552 = vadd.f32 %v480, %v536
        %v553 = vadd.f32 %v481, %v537
        %v554 = vadd.f32 %v482, %v538
        %v555 = vadd.f32 %v483, %v539
        %556 = vset.pattern.permute.xlu0 5
        %557 = vperm.xlu0 %556, %v208
        %v558 = vpop.permute.xlu0 %557
        %560 = vset.pattern.permute.xlu0 5
        %561 = vperm.xlu0 %560, %v209
        %v562 = vpop.permute.xlu0 %561
        %v564 = vlaneseq
        %v565 = vshrl.u32 %v564, 7
        %v566 = vsub.s32 5, %v565
        %v567 = vrot.slane %v200, %v566
        %v568 = vlaneseq
        %v569 = vshrl.u32 %v568, 7
        %v570 = vsub.s32 5, %v569
        %v571 = vrot.slane %v201, %v570
        %v572 = vlaneseq
        %v573 = vshrl.u32 %v572, 7
        %v574 = vsub.s32 5, %v573
        %v575 = vrot.slane %v202, %v574
        %v576 = vlaneseq
        %v577 = vshrl.u32 %v576, 7
        %v578 = vsub.s32 5, %v577
        %v579 = vrot.slane %v203, %v578
        %v580 = vlaneseq
        %v581 = vshrl.u32 %v580, 7
        %v582 = vsub.s32 5, %v581
        %v583 = vrot.slane %v204, %v582
        %v584 = vlaneseq
        %v585 = vshrl.u32 %v584, 7
        %v586 = vsub.s32 5, %v585
        %v587 = vrot.slane %v205, %v586
        %v588 = vlaneseq
        %v589 = vshrl.u32 %v588, 7
        %v590 = vsub.s32 5, %v589
        %v591 = vrot.slane %v206, %v590
        %v592 = vlaneseq
        %v593 = vshrl.u32 %v592, 7
        %v594 = vsub.s32 5, %v593
        %v595 = vrot.slane %v207, %v594
        %v596 = vmul.f32 %v558, %v567
        %v597 = vmul.f32 %v558, %v571
        %v598 = vmul.f32 %v558, %v575
        %v599 = vmul.f32 %v558, %v579
        %v600 = vmul.f32 %v558, %v583
        %v601 = vmul.f32 %v558, %v587
        %v602 = vmul.f32 %v558, %v591
        %v603 = vmul.f32 %v558, %v595
        %v604 = vmul.f32 %v562, %v567
        %v605 = vmul.f32 %v562, %v571
        %v606 = vmul.f32 %v562, %v575
        %v607 = vmul.f32 %v562, %v579
        %v608 = vmul.f32 %v562, %v583
        %v609 = vmul.f32 %v562, %v587
        %v610 = vmul.f32 %v562, %v591
        %v611 = vmul.f32 %v562, %v595
        %v612 = vadd.f32 %v540, %v596
        %v613 = vadd.f32 %v541, %v597
        %v614 = vadd.f32 %v542, %v598
        %v615 = vadd.f32 %v543, %v599
        %v616 = vadd.f32 %v544, %v600
        %v617 = vadd.f32 %v545, %v601
        %v618 = vadd.f32 %v546, %v602
        %v619 = vadd.f32 %v547, %v603
        %v620 = vadd.f32 %v548, %v604
        %v621 = vadd.f32 %v549, %v605
        %v622 = vadd.f32 %v550, %v606
        %v623 = vadd.f32 %v551, %v607
        %v624 = vadd.f32 %v552, %v608
        %v625 = vadd.f32 %v553, %v609
        %v626 = vadd.f32 %v554, %v610
        %v627 = vadd.f32 %v555, %v611
        %v628 = vld [vmem:[%s2] sm:$0xff]
        %v629 = vld [vmem:[%s2 + $0x8] sm:$0xff]
        %631 = vset.pattern.permute.xlu0 0
        %632 = vperm.xlu0 %631, %v628
        %v633 = vpop.permute.xlu0 %632
        %636 = vset.pattern.permute.xlu0 0
        %637 = vperm.xlu0 %636, %v629
        %v638 = vpop.permute.xlu0 %637
        %v640 = vadd.f32 %v612, %v633
        %v641 = vadd.f32 %v613, %v633
        %v642 = vadd.f32 %v614, %v633
        %v643 = vadd.f32 %v615, %v633
        %v644 = vadd.f32 %v616, %v633
        %v645 = vadd.f32 %v617, %v633
        %v646 = vadd.f32 %v618, %v633
        %v647 = vadd.f32 %v619, %v633
        %v648 = vadd.f32 %v620, %v638
        %v649 = vadd.f32 %v621, %v638
        %v650 = vadd.f32 %v622, %v638
        %v651 = vadd.f32 %v623, %v638
        %v652 = vadd.f32 %v624, %v638
        %v653 = vadd.f32 %v625, %v638
        %v654 = vadd.f32 %v626, %v638
        %v655 = vadd.f32 %v627, %v638
        %v656 = vmax.f32 %v640, 0.0
        %v657 = vmax.f32 %v641, 0.0
        %v658 = vmax.f32 %v642, 0.0
        %v659 = vmax.f32 %v643, 0.0
        %v660 = vmax.f32 %v644, 0.0
        %v661 = vmax.f32 %v645, 0.0
        %v662 = vmax.f32 %v646, 0.0
        %v663 = vmax.f32 %v647, 0.0
        %v664 = vmax.f32 %v648, 0.0
        %v665 = vmax.f32 %v649, 0.0
        %v666 = vmax.f32 %v650, 0.0
        %v667 = vmax.f32 %v651, 0.0
        %v668 = vmax.f32 %v652, 0.0
        %v669 = vmax.f32 %v653, 0.0
        %v670 = vmax.f32 %v654, 0.0
        %v671 = vmax.f32 %v655, 0.0
        %672 = vst [vmem:[%s188] sm:$0xff] %v656
        %673 = vst [vmem:[%s188 + $0x8] sm:$0xff] %v657
        %674 = vst [vmem:[%s188 + $0x10] sm:$0xff] %v658
        %675 = vst [vmem:[%s188 + $0x18] sm:$0xff] %v659
        %676 = vst [vmem:[%s188 + $0x20] sm:$0xff] %v660
        %677 = vst [vmem:[%s188 + $0x28] sm:$0xff] %v661
        %678 = vst [vmem:[%s188 + $0x30] sm:$0xff] %v662
        %679 = vst [vmem:[%s188 + $0x38] sm:$0xff] %v663
        %680 = vst [vmem:[%s188 + $0x40] sm:$0xff] %v664
        %681 = vst [vmem:[%s188 + $0x48] sm:$0xff] %v665
        %682 = vst [vmem:[%s188 + $0x50] sm:$0xff] %v666
        %683 = vst [vmem:[%s188 + $0x58] sm:$0xff] %v667
        %684 = vst [vmem:[%s188 + $0x60] sm:$0xff] %v668
        %685 = vst [vmem:[%s188 + $0x68] sm:$0xff] %v669
        %686 = vst [vmem:[%s188 + $0x70] sm:$0xff] %v670
        %687 = vst [vmem:[%s188 + $0x78] sm:$0xff] %v671
        %688 = vst [vmem:[%s188 + $0x80] sm:$0xff] %v656
        %689 = vst [vmem:[%s188 + $0x88] sm:$0xff] %v657
        %690 = vst [vmem:[%s188 + $0x90] sm:$0xff] %v658
        %691 = vst [vmem:[%s188 + $0x98] sm:$0xff] %v659
        %692 = vst [vmem:[%s188 + $0xa0] sm:$0xff] %v660
        %693 = vst [vmem:[%s188 + $0xa8] sm:$0xff] %v661
        %694 = vst [vmem:[%s188 + $0xb0] sm:$0xff] %v662
        %695 = vst [vmem:[%s188 + $0xb8] sm:$0xff] %v663
        %696 = vst [vmem:[%s188 + $0xc0] sm:$0xff] %v664
        %697 = vst [vmem:[%s188 + $0xc8] sm:$0xff] %v665
        %698 = vst [vmem:[%s188 + $0xd0] sm:$0xff] %v666
        %699 = vst [vmem:[%s188 + $0xd8] sm:$0xff] %v667
        %700 = vst [vmem:[%s188 + $0xe0] sm:$0xff] %v668
        %701 = vst [vmem:[%s188 + $0xe8] sm:$0xff] %v669
        %702 = vst [vmem:[%s188 + $0xf0] sm:$0xff] %v670
        %703 = vst [vmem:[%s188 + $0xf8] sm:$0xff] %v671
        %704 = vst [vmem:[%s188 + $0x100] sm:$0xff] %v656
        %705 = vst [vmem:[%s188 + $0x108] sm:$0xff] %v657
        %706 = vst [vmem:[%s188 + $0x110] sm:$0xff] %v658
        %707 = vst [vmem:[%s188 + $0x118] sm:$0xff] %v659
        %708 = vst [vmem:[%s188 + $0x120] sm:$0xff] %v660
        %709 = vst [vmem:[%s188 + $0x128] sm:$0xff] %v661
        %710 = vst [vmem:[%s188 + $0x130] sm:$0xff] %v662
        %711 = vst [vmem:[%s188 + $0x138] sm:$0xff] %v663
        %712 = vst [vmem:[%s188 + $0x140] sm:$0xff] %v664
        %713 = vst [vmem:[%s188 + $0x148] sm:$0xff] %v665
        %714 = vst [vmem:[%s188 + $0x150] sm:$0xff] %v666
        %715 = vst [vmem:[%s188 + $0x158] sm:$0xff] %v667
        %716 = vst [vmem:[%s188 + $0x160] sm:$0xff] %v668
        %717 = vst [vmem:[%s188 + $0x168] sm:$0xff] %v669
        %718 = vst [vmem:[%s188 + $0x170] sm:$0xff] %v670
        %719 = vst [vmem:[%s188 + $0x178] sm:$0xff] %v671
        %s720 = sand.u32 %s109, 1
        %s721 = scalar_lea.sflag [#allocation3], %s720
        %s722 = sand.u32 %s109, 1
        %s723 = smul.addr %s722, 384
        %s724 = scalar_lea.vmem [#allocation2], %s723
        // Predicated region
        $region33: #{multiscale_cnn_module1.1} parent=31 // pred_check
          %p725 = pneg %p119
        $region34: #{multiscale_cnn_module1.1} parent=31 // pred_check_branch
          %727 = sbr.rel (%p725) target = $region36
        $region35: #{multiscale_cnn_module1.1} parent=31 // pred_region
          %s728 = smul.u32 8, %s22
          %s730 = ssub.s32 6144, 6144
          %731 = vsyncadd %s721, %s730
          %s732 = smul.addr %s21, 48
          %s733 = sadd.s32 %s728, %s732
          %s734 = smul.addr %s733, 128
          %s735 = scalar_lea.hbm %s3, %s734
          %s736 = sshll.u32 %s724, 4
          %s737 = int_to_ptr.vmem [resolvable:$true] %s736
          %742 = dma.vmem_to_hbm [thread:$0]  %s737, 6144, %s735, %s721, 1024, 1024, 64
        $region36: #{multiscale_cnn_module1.1} parent=31 // pred_fallthru
          _
      $region32: #{multiscale_cnn_module1.1} parent=5 // pred_fallthru
        _
      %p743 = scmp.le.s32.totalorder 2, %s12
      // Predicated region
      $region37: #{multiscale_cnn_module1.1} parent=5 // pred_check
        %p744 = pneg %p743
      $region38: #{multiscale_cnn_module1.1} parent=5 // pred_check_branch
        %746 = sbr.rel (%p744) target = $region40
      $region39: #{multiscale_cnn_module1.1} parent=5 // pred_region
        %s747 = ssub.s32 %s12, 2
        // Predicated region
        $region41: #{multiscale_cnn_module1.1} parent=39 // pred_check
          %p748 = pneg %p125
        $region42: #{multiscale_cnn_module1.1} parent=39 // pred_check_branch
          %750 = sbr.rel (%p748) target = $region44
        $region43: #{multiscale_cnn_module1.1} parent=39 // pred_region
          %s751 = sand.u32 %s110, 1
          %s752 = scalar_lea.sflag [#allocation3], %s751
          %s753 = sand.u32 %s110, 1
          %s754 = smul.addr %s753, 384
          %s755 = scalar_lea.vmem [#allocation2], %s754
          %756 = dma.done %s752, 6144
        $region44: #{multiscale_cnn_module1.1} parent=39 // pred_fallthru
          _
      $region40: #{multiscale_cnn_module1.1} parent=5 // pred_fallthru
        _
    $region6: #{multiscale_cnn_module1.1} parent=1 // loop_footer
      %s16 = sadd.s32 1, %s12
    $region7: #{multiscale_cnn_module1.1} parent=1 // loop_footer_branch
      %11 = sbr.rel target = $region3
    $region8: #{multiscale_cnn_module1.1} parent=1 // loop_exit
      _
    %757 = vsyncpa [#allocation3], 1
    %s758 = scalar_lea.sflag [#allocation3], 1
    %759 = vsyncpa %s758, 1

</llo_original>
